<compile_context>
chip_gen: v7x
topology: tpu7x:2x2x1
jax: 0.10.0
libtpu: 0.0.40
codegen_flags: <defaults>
</compile_context>

<pallas_src>
import jax
import jax.numpy as jnp
from jax.experimental import pallas as pl
from jax.experimental.pallas import tpu as pltpu

LN_EPS = 1e-5


def _round_up(x, m):
    return (x + m - 1) // m * m


def _pick_tm(mp):
    # Prefer >=2 grid steps so both v7x TensorCores get work; tiles up to 256 rows.
    for tm in (256, 128, 64, 32, 16, 8):
        if mp % tm == 0 and mp // tm >= 2:
            return tm
    for tm in (256, 128, 64, 32, 16, 8):
        if mp % tm == 0:
            return tm
    return mp


def _erf(x):
    # Abramowitz & Stegun 7.1.26 rational approximation (max abs err ~1.5e-7);
    # only exp + VPU arithmetic, so it lowers cleanly and matches PyTorch's exact
    # (erf-based) nn.GELU to float32 noise level.
    a1, a2, a3 = 0.254829592, -0.284496736, 1.421413741
    a4, a5, p = -1.453152027, 1.061405429, 0.3275911
    sgn = jnp.where(x >= 0.0, 1.0, -1.0)
    ax = jnp.abs(x)
    t = 1.0 / (1.0 + p * ax)
    poly = ((((a5 * t + a4) * t + a3) * t + a2) * t + a1) * t
    return sgn * (1.0 - poly * jnp.exp(-ax * ax))


def _gelu_exact(x):
    return 0.5 * x * (1.0 + _erf(x * 0.7071067811865475))


# ---------------------------------------------------------------------------
# fused kernel: LayerNorm -> Linear1 -> GELU -> Linear2 -> +bias -> +residual
# ---------------------------------------------------------------------------
def _ffn_kernel(x_ref, g_ref, be_ref, w1_ref, b1_ref, w2_ref, b2_ref, o_ref):
    x = x_ref[...].astype(jnp.float32)                     # (TM, D), residual kept fp32

    # ----- LayerNorm (fp32, lane-axis reduce on the XLU) -----
    mean = jnp.mean(x, axis=-1, keepdims=True)
    xc = x - mean
    var = jnp.mean(xc * xc, axis=-1, keepdims=True)
    xn = xc * jax.lax.rsqrt(var + LN_EPS)
    xn = xn * g_ref[...] + be_ref[...]                     # (1, D) broadcast

    # ----- Linear1 + GELU (bf16 MXU operands, fp32 accumulate & epilogue) -----
    h = jnp.dot(xn.astype(jnp.bfloat16), w1_ref[...],
                preferred_element_type=jnp.float32) + b1_ref[...]
    h = _gelu_exact(h)
    # TODO(synk): Dropout with p>0 (training mode) would need pltpu.prng_*; the
    # module default p=0.0 is the identity, so it is omitted here.

    # ----- Linear2 + bias + residual -----
    y = jnp.dot(h.astype(jnp.bfloat16), w2_ref[...],
                preferred_element_type=jnp.float32) + b2_ref[...]
    o_ref[...] = (x + y).astype(o_ref.dtype)


@jax.jit
def feed_forward_block(params, x):
    """x: (..., D) float32 -> (..., D) float32, matching FeedForwardBlock.forward."""
    orig_shape = x.shape
    D = orig_shape[-1]
    H = params["w1"].shape[1]
    xm = x.reshape(-1, D)
    M = xm.shape[0]
    Mp = _round_up(M, 8)                                   # minimal sublane pad only
    if Mp != M:
        xm = jnp.zeros((Mp, D), xm.dtype).at[:M].set(xm)
    TM = _pick_tm(Mp)

    out = pl.pallas_call(
        _ffn_kernel,
        out_shape=jax.ShapeDtypeStruct((Mp, D), jnp.float32),
        grid=(Mp // TM,),
        in_specs=[
            pl.BlockSpec((TM, D), lambda i: (i, 0)),       # x token tile
            pl.BlockSpec((1, D), lambda i: (0, 0)),        # LayerNorm gamma
            pl.BlockSpec((1, D), lambda i: (0, 0)),        # LayerNorm beta
            pl.BlockSpec((D, H), lambda i: (0, 0)),        # W1 (bf16, pre-transposed)
            pl.BlockSpec((1, H), lambda i: (0, 0)),        # b1
            pl.BlockSpec((H, D), lambda i: (0, 0)),        # W2 (bf16, pre-transposed)
            pl.BlockSpec((1, D), lambda i: (0, 0)),        # b2
        ],
        out_specs=pl.BlockSpec((TM, D), lambda i: (i, 0)),
        compiler_params=pltpu.CompilerParams(
            dimension_semantics=("parallel",)),
    )(xm, params["ln_g"], params["ln_b"],
      params["w1"], params["b1"], params["w2"], params["b2"])
    return out[:M].reshape(orig_shape)


# ---------------------------------------------------------------------------
# deterministic synthetic parameters (PyTorch nn.Linear-style init)
# ---------------------------------------------------------------------------
def init_params(key, dim, hidden_dim=None):
    hidden_dim = hidden_dim or dim * 4
    k1, k2, k3, k4 = jax.random.split(key, 4)
    bound1 = 1.0 / (dim ** 0.5)
    bound2 = 1.0 / (hidden_dim ** 0.5)
    w1 = jax.random.uniform(k1, (dim, hidden_dim), jnp.float32, -bound1, bound1)
    b1 = jax.random.uniform(k2, (1, hidden_dim), jnp.float32, -bound1, bound1)
    w2 = jax.random.uniform(k3, (hidden_dim, dim), jnp.float32, -bound2, bound2)
    b2 = jax.random.uniform(k4, (1, dim), jnp.float32, -bound2, bound2)
    fp32 = dict(ln_g=jnp.ones((1, dim), jnp.float32),
                ln_b=jnp.zeros((1, dim), jnp.float32),
                w1=w1, b1=b1, w2=w2, b2=b2)
    # kernel params: MXU operands pre-cast to bf16 ONCE here, not per forward call
    kern = dict(fp32)
    kern["w1"] = w1.astype(jnp.bfloat16)
    kern["w2"] = w2.astype(jnp.bfloat16)
    return kern, fp32


def reference_forward(p, x):
    mean = jnp.mean(x, axis=-1, keepdims=True)
    var = jnp.mean((x - mean) ** 2, axis=-1, keepdims=True)
    xn = (x - mean) * jax.lax.rsqrt(var + LN_EPS) * p["ln_g"][0] + p["ln_b"][0]
    h = jax.nn.gelu(xn @ p["w1"] + p["b1"][0], approximate=False)
    return x + (h @ p["w2"] + p["b2"][0])


if __name__ == "__main__":
    DIM = 32
    B, S = 2, 8                              # hidden_dim defaults to dim * 4 = 128
    kp, kx = jax.random.split(jax.random.PRNGKey(0))
    kern_params, fp32_params = init_params(kp, DIM)
    x = jax.random.normal(kx, (B, S, DIM), jnp.float32)

    out = feed_forward_block(kern_params, x)
    jax.block_until_ready(out)

    ref = reference_forward(fp32_params, x)
    assert out.shape == x.shape, out.shape
    assert bool(jnp.isfinite(out).all())
    assert bool(jnp.allclose(out, ref, atol=5e-2, rtol=5e-2)), \
        float(jnp.max(jnp.abs(out - ref)))
    print("KERNEL_OK")
</pallas_src>

<mosaic_0001>
module attributes {stable_mosaic.version = 11 : i64} {
  func.func @_ffn_kernel(%arg0: i32, %arg1: memref<8x32xf32, #tpu.memory_space<vmem>>, %arg2: memref<1x32xf32, #tpu.memory_space<vmem>>, %arg3: memref<1x32xf32, #tpu.memory_space<vmem>>, %arg4: memref<32x128xbf16, #tpu.memory_space<vmem>>, %arg5: memref<1x128xf32, #tpu.memory_space<vmem>>, %arg6: memref<128x32xbf16, #tpu.memory_space<vmem>>, %arg7: memref<1x32xf32, #tpu.memory_space<vmem>>, %arg8: memref<8x32xf32, #tpu.memory_space<vmem>>) attributes {dimension_semantics = [#tpu.dimension_semantics<parallel>], iteration_bounds = array<i64: 2>, scalar_prefetch = 0 : i64, scratch_operands = 0 : i64, tpu.core_type = #tpu.core_type<tc>, window_params = [{transform_indices = @transform_0, window_bounds = array<i64: 8, 32>}, {pipeline_mode = #tpu.pipeline_mode<synchronous>, transform_indices = @transform_1, window_bounds = array<i64: 1, 32>}, {pipeline_mode = #tpu.pipeline_mode<synchronous>, transform_indices = @transform_2, window_bounds = array<i64: 1, 32>}, {pipeline_mode = #tpu.pipeline_mode<synchronous>, transform_indices = @transform_3, window_bounds = array<i64: 32, 128>}, {pipeline_mode = #tpu.pipeline_mode<synchronous>, transform_indices = @transform_4, window_bounds = array<i64: 1, 128>}, {pipeline_mode = #tpu.pipeline_mode<synchronous>, transform_indices = @transform_5, window_bounds = array<i64: 128, 32>}, {pipeline_mode = #tpu.pipeline_mode<synchronous>, transform_indices = @transform_6, window_bounds = array<i64: 1, 32>}, {transform_indices = @transform_7, window_bounds = array<i64: 8, 32>}]} {
    %c0 = arith.constant 0 : index
    %c0_0 = arith.constant 0 : index
    %0 = vector.load %arg1[%c0, %c0_0] : memref<8x32xf32, #tpu.memory_space<vmem>>, vector<8x32xf32>
    %cst = arith.constant dense<0.000000e+00> : vector<8xf32>
    %1 = vector.multi_reduction <add>, %0, %cst [1] : vector<8x32xf32> to vector<8xf32>
    %2 = vector.shape_cast %1 : vector<8xf32> to vector<8x1xf32>
    %cst_1 = arith.constant 3.200000e+01 : f32
    %3 = vector.broadcast %cst_1 : f32 to vector<8x1xf32>
    %4 = arith.divf %2, %3 : vector<8x1xf32>
    %5 = vector.broadcast %4 : vector<8x1xf32> to vector<8x32xf32>
    %6 = arith.subf %0, %5 : vector<8x32xf32>
    %7 = arith.mulf %6, %6 : vector<8x32xf32>
    %cst_2 = arith.constant dense<0.000000e+00> : vector<8xf32>
    %8 = vector.multi_reduction <add>, %7, %cst_2 [1] : vector<8x32xf32> to vector<8xf32>
    %9 = vector.shape_cast %8 : vector<8xf32> to vector<8x1xf32>
    %cst_3 = arith.constant 3.200000e+01 : f32
    %10 = vector.broadcast %cst_3 : f32 to vector<8x1xf32>
    %11 = arith.divf %9, %10 : vector<8x1xf32>
    %cst_4 = arith.constant 9.99999974E-6 : f32
    %12 = vector.broadcast %cst_4 : f32 to vector<8x1xf32>
    %13 = arith.addf %11, %12 : vector<8x1xf32>
    %14 = math.rsqrt %13 : vector<8x1xf32>
    %15 = vector.broadcast %14 : vector<8x1xf32> to vector<8x32xf32>
    %16 = arith.mulf %6, %15 : vector<8x32xf32>
    %c0_5 = arith.constant 0 : index
    %c0_6 = arith.constant 0 : index
    %17 = vector.load %arg2[%c0_5, %c0_6] : memref<1x32xf32, #tpu.memory_space<vmem>>, vector<1x32xf32>
    %18 = vector.broadcast %17 : vector<1x32xf32> to vector<8x32xf32>
    %19 = arith.mulf %16, %18 : vector<8x32xf32>
    %c0_7 = arith.constant 0 : index
    %c0_8 = arith.constant 0 : index
    %20 = vector.load %arg3[%c0_7, %c0_8] : memref<1x32xf32, #tpu.memory_space<vmem>>, vector<1x32xf32>
    %21 = vector.broadcast %20 : vector<1x32xf32> to vector<8x32xf32>
    %22 = arith.addf %19, %21 : vector<8x32xf32>
    %23 = arith.truncf %22 : vector<8x32xf32> to vector<8x32xbf16>
    %c0_9 = arith.constant 0 : index
    %c0_10 = arith.constant 0 : index
    %24 = vector.load %arg4[%c0_9, %c0_10] : memref<32x128xbf16, #tpu.memory_space<vmem>>, vector<32x128xbf16>
    %cst_11 = arith.constant dense<0.000000e+00> : vector<8x128xf32>
    %25 = tpu.matmul %23, %24, %cst_11 {dimension_numbers = #tpu.dot_dimension_numbers<[1], [0], [0], [1], [0, 0, 1, 1], [], []>} : vector<8x32xbf16>, vector<32x128xbf16>, vector<8x128xf32> -> vector<8x128xf32>
    %c0_12 = arith.constant 0 : index
    %c0_13 = arith.constant 0 : index
    %26 = vector.load %arg5[%c0_12, %c0_13] : memref<1x128xf32, #tpu.memory_space<vmem>>, vector<1x128xf32>
    %27 = vector.broadcast %26 : vector<1x128xf32> to vector<8x128xf32>
    %28 = arith.addf %25, %27 : vector<8x128xf32>
    %cst_14 = arith.constant 5.000000e-01 : f32
    %29 = vector.broadcast %cst_14 : f32 to vector<8x128xf32>
    %30 = arith.mulf %29, %28 : vector<8x128xf32>
    %cst_15 = arith.constant 0.707106769 : f32
    %31 = vector.broadcast %cst_15 : f32 to vector<8x128xf32>
    %32 = arith.mulf %28, %31 : vector<8x128xf32>
    %cst_16 = arith.constant 0.000000e+00 : f32
    %33 = vector.broadcast %cst_16 : f32 to vector<8x128xf32>
    %34 = arith.cmpf oge, %32, %33 : vector<8x128xf32>
    %cst_17 = arith.constant 1.000000e+00 : f32
    %cst_18 = arith.constant -1.000000e+00 : f32
    %35 = vector.broadcast %cst_17 : f32 to vector<8x128xf32>
    %36 = vector.broadcast %cst_18 : f32 to vector<8x128xf32>
    %37 = arith.select %34, %35, %36 : vector<8x128xi1>, vector<8x128xf32>
    %38 = math.absf %32 : vector<8x128xf32>
    %cst_19 = arith.constant 0.327591091 : f32
    %39 = vector.broadcast %cst_19 : f32 to vector<8x128xf32>
    %40 = arith.mulf %39, %38 : vector<8x128xf32>
    %cst_20 = arith.constant 1.000000e+00 : f32
    %41 = vector.broadcast %cst_20 : f32 to vector<8x128xf32>
    %42 = arith.addf %41, %40 : vector<8x128xf32>
    %cst_21 = arith.constant 1.000000e+00 : f32
    %43 = vector.broadcast %cst_21 : f32 to vector<8x128xf32>
    %44 = arith.divf %43, %42 : vector<8x128xf32>
    %cst_22 = arith.constant 1.06140542 : f32
    %45 = vector.broadcast %cst_22 : f32 to vector<8x128xf32>
    %46 = arith.mulf %45, %44 : vector<8x128xf32>
    %cst_23 = arith.constant -1.45315206 : f32
    %47 = vector.broadcast %cst_23 : f32 to vector<8x128xf32>
    %48 = arith.addf %46, %47 : vector<8x128xf32>
    %49 = arith.mulf %48, %44 : vector<8x128xf32>
    %cst_24 = arith.constant 1.42141378 : f32
    %50 = vector.broadcast %cst_24 : f32 to vector<8x128xf32>
    %51 = arith.addf %49, %50 : vector<8x128xf32>
    %52 = arith.mulf %51, %44 : vector<8x128xf32>
    %cst_25 = arith.constant -0.284496725 : f32
    %53 = vector.broadcast %cst_25 : f32 to vector<8x128xf32>
    %54 = arith.addf %52, %53 : vector<8x128xf32>
    %55 = arith.mulf %54, %44 : vector<8x128xf32>
    %cst_26 = arith.constant 0.254829586 : f32
    %56 = vector.broadcast %cst_26 : f32 to vector<8x128xf32>
    %57 = arith.addf %55, %56 : vector<8x128xf32>
    %58 = arith.mulf %57, %44 : vector<8x128xf32>
    %cst_27 = arith.constant 0.000000e+00 : f32
    %59 = vector.broadcast %cst_27 : f32 to vector<8x128xf32>
    %60 = arith.subf %59, %38 : vector<8x128xf32>
    %61 = arith.mulf %60, %38 : vector<8x128xf32>
    %62 = math.exp %61 : vector<8x128xf32>
    %63 = arith.mulf %58, %62 : vector<8x128xf32>
    %cst_28 = arith.constant 1.000000e+00 : f32
    %64 = vector.broadcast %cst_28 : f32 to vector<8x128xf32>
    %65 = arith.subf %64, %63 : vector<8x128xf32>
    %66 = arith.mulf %37, %65 : vector<8x128xf32>
    %cst_29 = arith.constant 1.000000e+00 : f32
    %67 = vector.broadcast %cst_29 : f32 to vector<8x128xf32>
    %68 = arith.addf %67, %66 : vector<8x128xf32>
    %69 = arith.mulf %30, %68 : vector<8x128xf32>
    %70 = arith.truncf %69 : vector<8x128xf32> to vector<8x128xbf16>
    %c0_30 = arith.constant 0 : index
    %c0_31 = arith.constant 0 : index
    %71 = vector.load %arg6[%c0_30, %c0_31] : memref<128x32xbf16, #tpu.memory_space<vmem>>, vector<128x32xbf16>
    %cst_32 = arith.constant dense<0.000000e+00> : vector<8x32xf32>
    %72 = tpu.matmul %70, %71, %cst_32 {dimension_numbers = #tpu.dot_dimension_numbers<[1], [0], [0], [1], [0, 0, 1, 1], [], []>} : vector<8x128xbf16>, vector<128x32xbf16>, vector<8x32xf32> -> vector<8x32xf32>
    %c0_33 = arith.constant 0 : index
    %c0_34 = arith.constant 0 : index
    %73 = vector.load %arg7[%c0_33, %c0_34] : memref<1x32xf32, #tpu.memory_space<vmem>>, vector<1x32xf32>
    %74 = vector.broadcast %73 : vector<1x32xf32> to vector<8x32xf32>
    %75 = arith.addf %72, %74 : vector<8x32xf32>
    %76 = arith.addf %0, %75 : vector<8x32xf32>
    %c0_35 = arith.constant 0 : index
    %c0_36 = arith.constant 0 : index
    %77 = vector.load %arg8[%c0_35, %c0_36] : memref<8x32xf32, #tpu.memory_space<vmem>>, vector<8x32xf32>
    tpu.vector_store %arg8[%c0_35, %c0_36], %76 {strides = array<i32>} : memref<8x32xf32, #tpu.memory_space<vmem>>, vector<8x32xf32>,
    return
  }
  func.func @transform_0(%arg0: i32) -> (i32, i32) {
    %c0_i32 = arith.constant 0 : i32
    %c0_i32_0 = arith.constant 0 : i32
    return %arg0, %c0_i32 : i32, i32
  }
  func.func @transform_1(%arg0: i32) -> (i32, i32) {
    %c0_i32 = arith.constant 0 : i32
    %c0_i32_0 = arith.constant 0 : i32
    %c0_i32_1 = arith.constant 0 : i32
    return %c0_i32, %c0_i32_0 : i32, i32
  }
  func.func @transform_2(%arg0: i32) -> (i32, i32) {
    %c0_i32 = arith.constant 0 : i32
    %c0_i32_0 = arith.constant 0 : i32
    %c0_i32_1 = arith.constant 0 : i32
    return %c0_i32, %c0_i32_0 : i32, i32
  }
  func.func @transform_3(%arg0: i32) -> (i32, i32) {
    %c0_i32 = arith.constant 0 : i32
    %c0_i32_0 = arith.constant 0 : i32
    %c0_i32_1 = arith.constant 0 : i32
    return %c0_i32, %c0_i32_0 : i32, i32
  }
  func.func @transform_4(%arg0: i32) -> (i32, i32) {
    %c0_i32 = arith.constant 0 : i32
    %c0_i32_0 = arith.constant 0 : i32
    %c0_i32_1 = arith.constant 0 : i32
    return %c0_i32, %c0_i32_0 : i32, i32
  }
  func.func @transform_5(%arg0: i32) -> (i32, i32) {
    %c0_i32 = arith.constant 0 : i32
    %c0_i32_0 = arith.constant 0 : i32
    %c0_i32_1 = arith.constant 0 : i32
    return %c0_i32, %c0_i32_0 : i32, i32
  }
  func.func @transform_6(%arg0: i32) -> (i32, i32) {
    %c0_i32 = arith.constant 0 : i32
    %c0_i32_0 = arith.constant 0 : i32
    %c0_i32_1 = arith.constant 0 : i32
    return %c0_i32, %c0_i32_0 : i32, i32
  }
  func.func @transform_7(%arg0: i32) -> (i32, i32) {
    %c0_i32 = arith.constant 0 : i32
    %c0_i32_0 = arith.constant 0 : i32
    return %arg0, %c0_i32 : i32, i32
  }
}

</mosaic_0001>

<llo_original>
// kernel: feed_forward_block.1
$region0: #{feed_forward_block.1}
  #allocation0 [shape = 'u32[]', space=smem, size = 0x4, offset = 0x4, fixed_abs, tag = 'smem constant byte address 0x4 - core index']
  #allocation1 [shape = 'u32[144,128]{1,0:T(1,128)}', space=vmem, size = 0x12000, scoped, tag = 'internal scratch']
  %s0 = inlined_call_operand.vmem [shape: f32[16,32], index: 0, kind: input, shape index: {}]
  %s1 = inlined_call_operand.vmem [shape: f32[1,32], index: 1, kind: input, shape index: {}]
  %s2 = inlined_call_operand.vmem [shape: f32[1,32], index: 2, kind: input, shape index: {}]
  %s3 = inlined_call_operand.vmem [shape: bf16[32,128], index: 3, kind: input, shape index: {}]
  %s4 = inlined_call_operand.vmem [shape: f32[1,128], index: 4, kind: input, shape index: {}]
  %s5 = inlined_call_operand.vmem [shape: bf16[128,32], index: 5, kind: input, shape index: {}]
  %s6 = inlined_call_operand.vmem [shape: f32[1,32], index: 6, kind: input, shape index: {}]
  %s7 = inlined_call_operand.hbm [shape: f32[16,32], index: 7, kind: output, shape index: {}]
  %s8 = sld [smem:[#allocation0]]
  $region61: #{feed_forward_block.1} parent=0
    _
  %s10 = ssub.s32 1, %s8
  %s11 = scalar_select 0, %s10, %s8
  $region1: #{feed_forward_block.1} parent=0
    #allocation2 [shape = 'u8[8192]{0}', space=vmem, size = 0x2000, scoped, tag = 'output window, operand 0']
    #allocation3 [shape = 's32[2]{0}', space=sflag, size = 0x8, scoped, tag = 'scoped memory for feed_forward_block.1']
    %12 = vsyncpa [#allocation3], 0
    %s13 = scalar_lea.sflag [#allocation3], 1
    %14 = vsyncpa %s13, 0
    loop: start=0, step=1, limit=4
    $region2: #{feed_forward_block.1} parent=1 // loop_pre_header
      _
    $region3: #{feed_forward_block.1} parent=1 // loop_header
      %s16 = sphi 0, %s20
      %p17 = scmp.ge.s32.totalorder %s16, 4
      %s26 = sphi 0, %s28
      %s29 = sphi 0, %s26
      %s30 = sphi 0, %s29
      %s46 = sphi 0, %s30
      %s50 = sphi 0, %s50
      %s52 = sphi 0, %s50
      %s53 = sphi 0, %s52
      %s67 = sphi 0, %s53
      %s71 = sphi 0, %s71
      %s73 = sphi 0, %s71
      %s74 = sphi 0, %s73
      %s88 = sphi 0, %s74
      %s92 = sphi 0, %s92
      %s94 = sphi 0, %s92
      %s95 = sphi 0, %s94
      %s109 = sphi 0, %s95
      %s113 = sphi 0, %s113
      %s115 = sphi 0, %s113
      %s116 = sphi 0, %s115
      %s130 = sphi 0, %s116
      %s134 = sphi 0, %s134
      %s136 = sphi 0, %s134
      %s137 = sphi 0, %s136
      %s151 = sphi 0, %s137
      %s155 = sphi 0, %s155
      %s157 = sphi 0, %s155
      %s158 = sphi 0, %s157
      %s172 = sphi 0, %s158
      %s178 = sphi 0, %s180
      %s181 = sphi 0, %s178
      %s182 = sphi 0, %s181
      %s198 = sphi 0, %s182
    $region4: #{feed_forward_block.1} parent=1 // loop_header_branch
      %19 = sbr.rel (%p17) target = $region8
    $region5: #{feed_forward_block.1} parent=1 // loop_body
      %s21 = ssub.s32 %s16, 1
      %s22 = ssub.s32 %s16, 2
      %s23 = sadd.s32 %s16, 1
      %s24 = ssub.s32 %s16, %s23
      %p25 = scmp.eq.s32.totalorder %s24, 0
      %s27 = sadd.s32 %s26, 1
      %s28 = scalar_select %p25, %s26, %s27
      %p31 = pneg %p25
      %p32 = scmp.eq.s32.totalorder %s16, 1
      %p33 = por %p31, %p32
      %p34 = scmp.ne.s32.totalorder %s26, %s29
      %p35 = scmp.eq.s32.totalorder %s16, 0
      %p36 = por %p34, %p35
      %p37 = scmp.ne.s32.totalorder %s26, %s29
      %p38 = scmp.eq.s32.totalorder %s21, 1
      %p39 = por %p37, %p38
      %p40 = scmp.ne.s32.totalorder %s29, %s30
      %p41 = scmp.eq.s32.totalorder %s21, 0
      %p42 = por %p40, %p41
      %p43 = scmp.ne.s32.totalorder %s29, %s30
      %p44 = scmp.eq.s32.totalorder %s22, 1
      %p45 = por %p43, %p44
      %p47 = scmp.ne.s32.totalorder %s30, %s46
      %p48 = scmp.eq.s32.totalorder %s22, 0
      %p49 = por %p47, %p48
      %s51 = sadd.s32 %s50, 1
      %p54 = scmp.eq.s32.totalorder %s16, 1
      %p55 = scmp.ne.s32.totalorder %s50, %s52
      %p56 = scmp.eq.s32.totalorder %s16, 0
      %p57 = por %p55, %p56
      %p58 = scmp.ne.s32.totalorder %s50, %s52
      %p59 = scmp.eq.s32.totalorder %s21, 1
      %p60 = por %p58, %p59
      %p61 = scmp.ne.s32.totalorder %s52, %s53
      %p62 = scmp.eq.s32.totalorder %s21, 0
      %p63 = por %p61, %p62
      %p64 = scmp.ne.s32.totalorder %s52, %s53
      %p65 = scmp.eq.s32.totalorder %s22, 1
      %p66 = por %p64, %p65
      %p68 = scmp.ne.s32.totalorder %s53, %s67
      %p69 = scmp.eq.s32.totalorder %s22, 0
      %p70 = por %p68, %p69
      %s72 = sadd.s32 %s71, 1
      %p75 = scmp.eq.s32.totalorder %s16, 1
      %p76 = scmp.ne.s32.totalorder %s71, %s73
      %p77 = scmp.eq.s32.totalorder %s16, 0
      %p78 = por %p76, %p77
      %p79 = scmp.ne.s32.totalorder %s71, %s73
      %p80 = scmp.eq.s32.totalorder %s21, 1
      %p81 = por %p79, %p80
      %p82 = scmp.ne.s32.totalorder %s73, %s74
      %p83 = scmp.eq.s32.totalorder %s21, 0
      %p84 = por %p82, %p83
      %p85 = scmp.ne.s32.totalorder %s73, %s74
      %p86 = scmp.eq.s32.totalorder %s22, 1
      %p87 = por %p85, %p86
      %p89 = scmp.ne.s32.totalorder %s74, %s88
      %p90 = scmp.eq.s32.totalorder %s22, 0
      %p91 = por %p89, %p90
      %s93 = sadd.s32 %s92, 1
      %p96 = scmp.eq.s32.totalorder %s16, 1
      %p97 = scmp.ne.s32.totalorder %s92, %s94
      %p98 = scmp.eq.s32.totalorder %s16, 0
      %p99 = por %p97, %p98
      %p100 = scmp.ne.s32.totalorder %s92, %s94
      %p101 = scmp.eq.s32.totalorder %s21, 1
      %p102 = por %p100, %p101
      %p103 = scmp.ne.s32.totalorder %s94, %s95
      %p104 = scmp.eq.s32.totalorder %s21, 0
      %p105 = por %p103, %p104
      %p106 = scmp.ne.s32.totalorder %s94, %s95
      %p107 = scmp.eq.s32.totalorder %s22, 1
      %p108 = por %p106, %p107
      %p110 = scmp.ne.s32.totalorder %s95, %s109
      %p111 = scmp.eq.s32.totalorder %s22, 0
      %p112 = por %p110, %p111
      %s114 = sadd.s32 %s113, 1
      %p117 = scmp.eq.s32.totalorder %s16, 1
      %p118 = scmp.ne.s32.totalorder %s113, %s115
      %p119 = scmp.eq.s32.totalorder %s16, 0
      %p120 = por %p118, %p119
      %p121 = scmp.ne.s32.totalorder %s113, %s115
      %p122 = scmp.eq.s32.totalorder %s21, 1
      %p123 = por %p121, %p122
      %p124 = scmp.ne.s32.totalorder %s115, %s116
      %p125 = scmp.eq.s32.totalorder %s21, 0
      %p126 = por %p124, %p125
      %p127 = scmp.ne.s32.totalorder %s115, %s116
      %p128 = scmp.eq.s32.totalorder %s22, 1
      %p129 = por %p127, %p128
      %p131 = scmp.ne.s32.totalorder %s116, %s130
      %p132 = scmp.eq.s32.totalorder %s22, 0
      %p133 = por %p131, %p132
      %s135 = sadd.s32 %s134, 1
      %p138 = scmp.eq.s32.totalorder %s16, 1
      %p139 = scmp.ne.s32.totalorder %s134, %s136
      %p140 = scmp.eq.s32.totalorder %s16, 0
      %p141 = por %p139, %p140
      %p142 = scmp.ne.s32.totalorder %s134, %s136
      %p143 = scmp.eq.s32.totalorder %s21, 1
      %p144 = por %p142, %p143
      %p145 = scmp.ne.s32.totalorder %s136, %s137
      %p146 = scmp.eq.s32.totalorder %s21, 0
      %p147 = por %p145, %p146
      %p148 = scmp.ne.s32.totalorder %s136, %s137
      %p149 = scmp.eq.s32.totalorder %s22, 1
      %p150 = por %p148, %p149
      %p152 = scmp.ne.s32.totalorder %s137, %s151
      %p153 = scmp.eq.s32.totalorder %s22, 0
      %p154 = por %p152, %p153
      %s156 = sadd.s32 %s155, 1
      %p159 = scmp.eq.s32.totalorder %s16, 1
      %p160 = scmp.ne.s32.totalorder %s155, %s157
      %p161 = scmp.eq.s32.totalorder %s16, 0
      %p162 = por %p160, %p161
      %p163 = scmp.ne.s32.totalorder %s155, %s157
      %p164 = scmp.eq.s32.totalorder %s21, 1
      %p165 = por %p163, %p164
      %p166 = scmp.ne.s32.totalorder %s157, %s158
      %p167 = scmp.eq.s32.totalorder %s21, 0
      %p168 = por %p166, %p167
      %p169 = scmp.ne.s32.totalorder %s157, %s158
      %p170 = scmp.eq.s32.totalorder %s22, 1
      %p171 = por %p169, %p170
      %p173 = scmp.ne.s32.totalorder %s158, %s172
      %p174 = scmp.eq.s32.totalorder %s22, 0
      %p175 = por %p173, %p174
      %s176 = ssub.s32 %s16, %s23
      %p177 = scmp.eq.s32.totalorder %s176, 0
      %s179 = sadd.s32 %s178, 1
      %s180 = scalar_select %p177, %s178, %s179
      %p183 = pneg %p177
      %p184 = scmp.eq.s32.totalorder %s16, 1
      %p185 = por %p183, %p184
      %p186 = scmp.ne.s32.totalorder %s178, %s181
      %p187 = scmp.eq.s32.totalorder %s16, 0
      %p188 = por %p186, %p187
      %p189 = scmp.ne.s32.totalorder %s178, %s181
      %p190 = scmp.eq.s32.totalorder %s21, 1
      %p191 = por %p189, %p190
      %p192 = scmp.ne.s32.totalorder %s181, %s182
      %p193 = scmp.eq.s32.totalorder %s21, 0
      %p194 = por %p192, %p193
      %p195 = scmp.ne.s32.totalorder %s181, %s182
      %p196 = scmp.eq.s32.totalorder %s22, 1
      %p197 = por %p195, %p196
      %p199 = scmp.ne.s32.totalorder %s182, %s198
      %p200 = scmp.eq.s32.totalorder %s22, 0
      %p201 = por %p199, %p200
      %p202 = scmp.le.s32.totalorder 1, %s16
      %p203 = scmp.lt.s32.totalorder %s16, 3
      %p204 = pnand %p202, %p203
      %p205 = pneg %p204
      // Predicated region
      $region9: #{feed_forward_block.1} parent=5 // pred_check
        _
      $region10: #{feed_forward_block.1} parent=5 // pred_check_branch
        %207 = sbr.rel (%p204) target = $region12
      $region11: #{feed_forward_block.1} parent=5 // pred_region
        %s208 = ssub.s32 %s16, 1
        // Predicated region
        $region13: #{feed_forward_block.1} parent=11 // pred_check
          %p209 = pneg %p63
        $region14: #{feed_forward_block.1} parent=11 // pred_check_branch
          %211 = sbr.rel (%p209) target = $region16
        $region15: #{feed_forward_block.1} parent=11 // pred_region
          _
        $region16: #{feed_forward_block.1} parent=11 // pred_fallthru
          _
        // Predicated region
        $region17: #{feed_forward_block.1} parent=11 // pred_check
          %p212 = pneg %p84
        $region18: #{feed_forward_block.1} parent=11 // pred_check_branch
          %214 = sbr.rel (%p212) target = $region20
        $region19: #{feed_forward_block.1} parent=11 // pred_region
          _
        $region20: #{feed_forward_block.1} parent=11 // pred_fallthru
          _
        // Predicated region
        $region21: #{feed_forward_block.1} parent=11 // pred_check
          %p215 = pneg %p105
        $region22: #{feed_forward_block.1} parent=11 // pred_check_branch
          %217 = sbr.rel (%p215) target = $region24
        $region23: #{feed_forward_block.1} parent=11 // pred_region
          _
        $region24: #{feed_forward_block.1} parent=11 // pred_fallthru
          _
        // Predicated region
        $region25: #{feed_forward_block.1} parent=11 // pred_check
          %p218 = pneg %p126
        $region26: #{feed_forward_block.1} parent=11 // pred_check_branch
          %220 = sbr.rel (%p218) target = $region28
        $region27: #{feed_forward_block.1} parent=11 // pred_region
          _
        $region28: #{feed_forward_block.1} parent=11 // pred_fallthru
          _
        // Predicated region
        $region29: #{feed_forward_block.1} parent=11 // pred_check
          %p221 = pneg %p147
        $region30: #{feed_forward_block.1} parent=11 // pred_check_branch
          %223 = sbr.rel (%p221) target = $region32
        $region31: #{feed_forward_block.1} parent=11 // pred_region
          _
        $region32: #{feed_forward_block.1} parent=11 // pred_fallthru
          _
        // Predicated region
        $region33: #{feed_forward_block.1} parent=11 // pred_check
          %p224 = pneg %p168
        $region34: #{feed_forward_block.1} parent=11 // pred_check_branch
          %226 = sbr.rel (%p224) target = $region36
        $region35: #{feed_forward_block.1} parent=11 // pred_region
          _
        $region36: #{feed_forward_block.1} parent=11 // pred_fallthru
          _
      $region12: #{feed_forward_block.1} parent=5 // pred_fallthru
        _
      %p227 = scmp.lt.s32.totalorder %s16, 2
      // Predicated region
      $region37: #{feed_forward_block.1} parent=5 // pred_check
        %p228 = pneg %p227
      $region38: #{feed_forward_block.1} parent=5 // pred_check_branch
        %230 = sbr.rel (%p228) target = $region40
      $region39: #{feed_forward_block.1} parent=5 // pred_region
        // Predicated region
        $region41: #{feed_forward_block.1} parent=39 // pred_check
          %p231 = pneg %p36
        $region42: #{feed_forward_block.1} parent=39 // pred_check_branch
          %233 = sbr.rel (%p231) target = $region44
        $region43: #{feed_forward_block.1} parent=39 // pred_region
          %p234 = scmp.lt.s32.totalorder %s16, 1
          %s235 = scalar_select %p234, %s16, 1
          %s236 = smul.addr %s235, 8
          %s237 = scalar_lea.vmem %s0, %s236
        $region44: #{feed_forward_block.1} parent=39 // pred_fallthru
          _
      $region40: #{feed_forward_block.1} parent=5 // pred_fallthru
        _
      %p238 = scmp.le.s32.totalorder 1, %s16
      %p239 = scmp.lt.s32.totalorder %s16, 3
      %p240 = pnand %p238, %p239
      %p241 = pneg %p240
      // Predicated region
      $region45: #{feed_forward_block.1} parent=5 // pred_check
        _
      $region46: #{feed_forward_block.1} parent=5 // pred_check_branch
        %243 = sbr.rel (%p240) target = $region48
      $region47: #{feed_forward_block.1} parent=5 // pred_region
        %s244 = ssub.s32 %s16, 1
        %p245 = scmp.lt.s32.totalorder %s21, 1
        %s246 = scalar_select %p245, %s21, 1
        %s247 = smul.addr %s246, 8
        %s248 = scalar_lea.vmem %s0, %s247
        %p249 = pneg %p42
        %p250 = pneg %p39
        %p251 = pneg %p63
        %p252 = pneg %p60
        %p253 = pneg %p84
        %p254 = pneg %p81
        %p255 = pneg %p105
        %p256 = pneg %p102
        %p257 = pneg %p126
        %p258 = pneg %p123
        %p259 = pneg %p147
        %p260 = pneg %p144
        %p261 = pneg %p168
        %p262 = pneg %p165
        %p263 = pneg %p194
        %p264 = pneg %p191
        %s265 = sand.u32 %s181, 1
        %s266 = scalar_lea.sflag [#allocation3], %s265
        %s267 = sand.u32 %s181, 1
        %s268 = smul.addr %s267, 8
        %s269 = scalar_lea.vmem [#allocation2], %s268
        %p270 = scmp.lt.s32.totalorder %s21, 1
        %s271 = scalar_select %p270, %s21, 1
        %s272 = smul.addr %s271, 8
        %s273 = scalar_lea.vmem %s0, %s272
        %v275 = vld [vmem:[%s273] sm:$0xff]
        %vm276 = vcmask 261120
        %v277 = vsel %vm276, %v275, 0.0
        %278 = vadd.xlane.f32.xlu0 %v277
        %v279 = vpop.xlane.xlu0 %278
        %v280 = vrcp.pop 32.0
        %v281 = vmul.f32 %v279, %v280
        %v282 = vsub.f32 %v275, %v281
        %v283 = vmul.f32 %v282, %v282
        %v284 = vsel %vm276, %v283, 0.0
        %285 = vadd.xlane.f32.xlu0 %v284
        %v286 = vpop.xlane.xlu0 %285
        %v287 = vmul.f32 %v286, %v280
        %v288 = vadd.f32 %v287, 1e-05
        %v289 = vrsqrt.pop %v288
        %v290 = vmul.f32 %v282, %v289
        %v291 = vld [vmem:[%s1] sm:$0x1]
        %v293 = vlaneseq
        %v294 = vshrl.u32 %v293, 7
        %v295 = vsub.s32 0, %v294
        %v296 = vrot.slane %v291, %v295
        %v298 = vmul.f32 %v290, %v296
        %v299 = vld [vmem:[%s2] sm:$0x1]
        %v301 = vlaneseq
        %v302 = vshrl.u32 %v301, 7
        %v303 = vsub.s32 0, %v302
        %v304 = vrot.slane %v299, %v303
        %v306 = vadd.f32 %v298, %v304
        %v307 = vpack.c.bf16 %v306, %v306
        %v308 = vld [vmem:[%s3] sm:$0xf]
        %v309 = vld [vmem:[%s3 + $0x4] sm:$0xf]
        %v310 = vld [vmem:[%s3 + $0x8] sm:$0xf]
        %v311 = vld [vmem:[%s3 + $0xc] sm:$0xf]
        %v312 = vld [vmem:[%s4] sm:$0x1]
        %v314 = vlaneseq
        %v315 = vshrl.u32 %v314, 7
        %v316 = vsub.s32 0, %v315
        %v317 = vrot.slane %v312, %v316
        %v323 = vunpack.c.l.b16 %v308
        %v324 = vunpack.c.l.b16 %v309
        %v325 = vunpack.c.l.b16 %v310
        %v326 = vunpack.c.l.b16 %v311
        %v327 = vpack.c.b16 %v324, %v323
        %v328 = vpack.c.b16 %v326, %v325
        %v332 = vsel %vm276, %v307, 0
        %334 = vmatprep.subr.bf16.mxu0 0
        %335 = vmatpush1.bf16.msra.mxu0 %v327
        %336 = vmatprep.subr.bf16.mxu0 0
        %337 = vmatpush1.bf16.msra.mxu0 %v328
        %338 = vmatprep.subr.bf16.mxu0 0
        %339 = vmatpush1.bf16.msra.mxu0 0
        %340 = vmatprep.subr.bf16.mxu0 0
        %341 = vmatpush1.bf16.msra.mxu0 0
        %342 = vmatprep.subr.bf16.mxu0 0
        %343 = vmatpush1.bf16.msra.mxu0 0
        %344 = vmatprep.subr.bf16.mxu0 0
        %345 = vmatpush1.bf16.msra.mxu0 0
        %346 = vmatprep.subr.bf16.mxu0 0
        %347 = vmatpush1.bf16.msra.mxu0 0
        %348 = vmatprep.subr.bf16.mxu0 0
        %349 = vmatpush1.bf16.msra.mxu0 0
        %350 = vmatprep.subr.bf16.mxu0 0
        %351 = vmatpush1.bf16.msra.mxu0 0
        %352 = vmatprep.subr.bf16.mxu0 0
        %353 = vmatpush1.bf16.msra.mxu0 0
        %354 = vmatprep.subr.bf16.mxu0 0
        %355 = vmatpush1.bf16.msra.mxu0 0
        %356 = vmatprep.subr.bf16.mxu0 0
        %357 = vmatpush1.bf16.msra.mxu0 0
        %358 = vmatprep.subr.bf16.mxu0 0
        %359 = vmatpush1.bf16.msra.mxu0 0
        %360 = vmatprep.subr.bf16.mxu0 0
        %361 = vmatpush1.bf16.msra.mxu0 0
        %362 = vmatprep.subr.bf16.mxu0 0
        %363 = vmatpush1.bf16.msra.mxu0 0
        %364 = vmatprep.subr.bf16.mxu0 0
        %365 = vmatpush1.bf16.msra.mxu0 0
        %366 = vmatprep.mubr.bf16.mxu0 0
        %367 = vmatmul.mubr.bf16.gmra.mrb[0].mxu0 %v332
        %v368 = vpop.f32.mrb[0].mxu0
        %v369 = vadd.f32 %v317, %v368
        %v370 = vpop.f32.mrb[0].mxu0
        %v371 = vpop.f32.mrb[0].mxu0
        %v372 = vpop.f32.mrb[0].mxu0
        %373 = vdwg.mxu0
        %v374 = vmul.f32 %v369, 0.5
        %v375 = vmul.f32 %v369, 0.70710677
        %vm376 = vcmp.ge.f32.partialorder %v375, 0.0
        %v377 = vsel %vm376, 1.0, -1.0
        %v378 = vand.u32 2147483647, %v375
        %v379 = vmul.f32 %v378, 0.3275911
        %v380 = vadd.f32 %v379, 1.0
        %v381 = vrcp.pop %v380
        %v382 = vmul.f32 1.0, %v381
        %v383 = vmul.f32 %v382, 1.0614054
        %v384 = vadd.f32 %v383, -1.4531521
        %v385 = vmul.f32 %v384, %v382
        %v386 = vadd.f32 %v385, 1.4214138
        %v387 = vmul.f32 %v386, %v382
        %v388 = vadd.f32 %v387, -0.28449672
        %v389 = vmul.f32 %v388, %v382
        %v390 = vadd.f32 %v389, 0.2548296
        %v391 = vmul.f32 %v390, %v382
        %v392 = vsub.f32 0.0, %v378
        %v393 = vmul.f32 %v392, %v378
        %v394 = vmul.f32 %v393, 1.442695
        %v395 = vpow.pop %v394
        %v396 = vmul.f32 %v391, %v395
        %v397 = vsub.f32 1.0, %v396
        %v398 = vmul.f32 %v377, %v397
        %v399 = vadd.f32 %v398, 1.0
        %v400 = vmul.f32 %v374, %v399
        %v401 = vpack.c.bf16 %v400, %v400
        %v402 = vld [vmem:[%s5] sm:$0xf]
        %v403 = vld [vmem:[%s5 + $0x4] sm:$0xf]
        %v404 = vld [vmem:[%s5 + $0x8] sm:$0xf]
        %v405 = vld [vmem:[%s5 + $0xc] sm:$0xf]
        %v406 = vld [vmem:[%s5 + $0x10] sm:$0xf]
        %v407 = vld [vmem:[%s5 + $0x14] sm:$0xf]
        %v408 = vld [vmem:[%s5 + $0x18] sm:$0xf]
        %v409 = vld [vmem:[%s5 + $0x1c] sm:$0xf]
        %v410 = vld [vmem:[%s5 + $0x20] sm:$0xf]
        %v411 = vld [vmem:[%s5 + $0x24] sm:$0xf]
        %v412 = vld [vmem:[%s5 + $0x28] sm:$0xf]
        %v413 = vld [vmem:[%s5 + $0x2c] sm:$0xf]
        %v414 = vld [vmem:[%s5 + $0x30] sm:$0xf]
        %v415 = vld [vmem:[%s5 + $0x34] sm:$0xf]
        %v416 = vld [vmem:[%s5 + $0x38] sm:$0xf]
        %v417 = vld [vmem:[%s5 + $0x3c] sm:$0xf]
        %v418 = vld [vmem:[%s6] sm:$0x1]
        %v420 = vlaneseq
        %v421 = vshrl.u32 %v420, 7
        %v422 = vsub.s32 0, %v421
        %v423 = vrot.slane %v418, %v422
        %v441 = vunpack.c.l.b16 %v402
        %v442 = vunpack.c.l.b16 %v403
        %v443 = vunpack.c.l.b16 %v404
        %v444 = vunpack.c.l.b16 %v405
        %v445 = vunpack.c.l.b16 %v406
        %v446 = vunpack.c.l.b16 %v407
        %v447 = vunpack.c.l.b16 %v408
        %v448 = vunpack.c.l.b16 %v409
        %v449 = vunpack.c.l.b16 %v410
        %v450 = vunpack.c.l.b16 %v411
        %v451 = vunpack.c.l.b16 %v412
        %v452 = vunpack.c.l.b16 %v413
        %v453 = vunpack.c.l.b16 %v414
        %v454 = vunpack.c.l.b16 %v415
        %v455 = vunpack.c.l.b16 %v416
        %v456 = vunpack.c.l.b16 %v417
        %v457 = vpack.c.b16 %v442, %v441
        %v458 = vpack.c.b16 %v444, %v443
        %v459 = vpack.c.b16 %v446, %v445
        %v460 = vpack.c.b16 %v448, %v447
        %v461 = vpack.c.b16 %v450, %v449
        %v462 = vpack.c.b16 %v452, %v451
        %v463 = vpack.c.b16 %v454, %v453
        %v464 = vpack.c.b16 %v456, %v455
        %473 = vmatprep.subr.bf16.mxu0 0
        %474 = vmatpush1.bf16.msra.mxu0 %v457
        %475 = vmatprep.subr.bf16.mxu0 0
        %476 = vmatpush1.bf16.msra.mxu0 %v458
        %477 = vmatprep.subr.bf16.mxu0 0
        %478 = vmatpush1.bf16.msra.mxu0 %v459
        %479 = vmatprep.subr.bf16.mxu0 0
        %480 = vmatpush1.bf16.msra.mxu0 %v460
        %481 = vmatprep.subr.bf16.mxu0 0
        %482 = vmatpush1.bf16.msra.mxu0 %v461
        %483 = vmatprep.subr.bf16.mxu0 0
        %484 = vmatpush1.bf16.msra.mxu0 %v462
        %485 = vmatprep.subr.bf16.mxu0 0
        %486 = vmatpush1.bf16.msra.mxu0 %v463
        %487 = vmatprep.subr.bf16.mxu0 0
        %488 = vmatpush1.bf16.msra.mxu0 %v464
        %489 = vmatprep.subr.bf16.mxu0 0
        %490 = vmatpush1.bf16.msra.mxu0 0
        %491 = vmatprep.subr.bf16.mxu0 0
        %492 = vmatpush1.bf16.msra.mxu0 0
        %493 = vmatprep.subr.bf16.mxu0 0
        %494 = vmatpush1.bf16.msra.mxu0 0
        %495 = vmatprep.subr.bf16.mxu0 0
        %496 = vmatpush1.bf16.msra.mxu0 0
        %497 = vmatprep.subr.bf16.mxu0 0
        %498 = vmatpush1.bf16.msra.mxu0 0
        %499 = vmatprep.subr.bf16.mxu0 0
        %500 = vmatpush1.bf16.msra.mxu0 0
        %501 = vmatprep.subr.bf16.mxu0 0
        %502 = vmatpush1.bf16.msra.mxu0 0
        %503 = vmatprep.subr.bf16.mxu0 0
        %504 = vmatpush1.bf16.msra.mxu0 0
        %505 = vmatprep.mubr.bf16.mxu0 0
        %506 = vmatmul.mubr.bf16.gmra.mrb[0].mxu0 %v401
        %v507 = vpop.f32.mrb[0].mxu0
        %v508 = vadd.f32 %v423, %v507
        %v509 = vpop.f32.mrb[0].mxu0
        %v510 = vpop.f32.mrb[0].mxu0
        %v511 = vpop.f32.mrb[0].mxu0
        %512 = vdwg.mxu0
        %v513 = vadd.f32 %v275, %v508
        %514 = vst.msk [vmem:[%s269] sm:$0xff] %vm276, %v513
        %s515 = sand.u32 %s181, 1
        %s516 = scalar_lea.sflag [#allocation3], %s515
        %s517 = sand.u32 %s181, 1
        %s518 = smul.addr %s517, 8
        %s519 = scalar_lea.vmem [#allocation2], %s518
        // Predicated region
        $region49: #{feed_forward_block.1} parent=47 // pred_check
          %p520 = pneg %p191
        $region50: #{feed_forward_block.1} parent=47 // pred_check_branch
          %522 = sbr.rel (%p520) target = $region52
        $region51: #{feed_forward_block.1} parent=47 // pred_region
          %s524 = ssub.s32 128, 128
          %525 = vsyncadd %s516, %s524
          %s526 = smul.addr %s21, 128
          %s527 = scalar_lea.hbm %s7, %s526
          %s529 = sshll.u32 %s519, 4
          %s530 = int_to_ptr.vmem [resolvable:$true] %s529
          %532 = dma.vmem_to_hbm [thread:$0]  %s530, 128, %s527, %s516
        $region52: #{feed_forward_block.1} parent=47 // pred_fallthru
          _
      $region48: #{feed_forward_block.1} parent=5 // pred_fallthru
        _
      %p533 = scmp.le.s32.totalorder 2, %s16
      // Predicated region
      $region53: #{feed_forward_block.1} parent=5 // pred_check
        %p534 = pneg %p533
      $region54: #{feed_forward_block.1} parent=5 // pred_check_branch
        %536 = sbr.rel (%p534) target = $region56
      $region55: #{feed_forward_block.1} parent=5 // pred_region
        %s537 = ssub.s32 %s16, 2
        // Predicated region
        $region57: #{feed_forward_block.1} parent=55 // pred_check
          %p538 = pneg %p197
        $region58: #{feed_forward_block.1} parent=55 // pred_check_branch
          %540 = sbr.rel (%p538) target = $region60
        $region59: #{feed_forward_block.1} parent=55 // pred_region
          %s541 = sand.u32 %s182, 1
          %s542 = scalar_lea.sflag [#allocation3], %s541
          %s543 = sand.u32 %s182, 1
          %s544 = smul.addr %s543, 8
          %s545 = scalar_lea.vmem [#allocation2], %s544
          %546 = dma.done %s542, 128
        $region60: #{feed_forward_block.1} parent=55 // pred_fallthru
          _
      $region56: #{feed_forward_block.1} parent=5 // pred_fallthru
        _
    $region6: #{feed_forward_block.1} parent=1 // loop_footer
      %s20 = sadd.s32 1, %s16
    $region7: #{feed_forward_block.1} parent=1 // loop_footer_branch
      %15 = sbr.rel target = $region3
    $region8: #{feed_forward_block.1} parent=1 // loop_exit
      _
    %547 = vsyncpa [#allocation3], 1
    %s548 = scalar_lea.sflag [#allocation3], 1
    %549 = vsyncpa %s548, 1

</llo_original>
